<compile_context>
chip_gen: v6e
topology: v6e:2x2x1
jax: 0.10.0
libtpu: 0.0.40
codegen_flags: <defaults>
</compile_context>

<pallas_src>
import jax
import jax.numpy as jnp
from jax import lax
from jax.experimental import pallas as pl
from jax.experimental.pallas import tpu as pltpu

# Streamed (x + logits) bytes per grid step.  >= ~1 MiB keeps the kernel HBM-bound
# rather than per-step-overhead bound on every TPU generation.
TARGET_STEP_BYTES = 2 * 1024 * 1024
# Scoped-VMEM ceiling: comfortably below v7x's 64 MiB physical VMEM (v5e/v6e have 128).
VMEM_LIMIT_BYTES = 48 * 1024 * 1024
MAX_BATCH_PER_STEP = 8


def _round_up(x, m):
    return ((x + m - 1) // m) * m


def _choose_tiling(N, C, K, HW, max_lanes_per_step=None):
    """Pick (nb, t_pix, num_tiles, ragged) from a per-step byte budget."""
    c_pad = _round_up(C, 8)
    k_pad = _round_up(K, 8)
    bytes_per_px = (c_pad + k_pad) * 4              # f32 x-column + logits-column (padded)
    lanes_target = max(128, TARGET_STEP_BYTES // bytes_per_px)
    if max_lanes_per_step is not None:
        lanes_target = max(128, min(lanes_target, max_lanes_per_step))

    if lanes_target >= HW:
        # Whole image fits in one tile; pack several batch elements per step (nb | N).
        t_pix, num_tiles, ragged = HW, 1, False
        nb = 1
        for cand in range(min(N, MAX_BATCH_PER_STEP), 0, -1):
            if N % cand == 0 and cand * HW <= lanes_target:
                nb = cand
                break
    else:
        nb = 1
        t_pix = (lanes_target // 128) * 128         # lane dim must be a 128-multiple
        num_tiles = pl.cdiv(HW, t_pix)
        ragged = (HW % t_pix) != 0
    return nb, t_pix, num_tiles, ragged


# ---------------------------------------------------------------------------
# Fused forward + analytic entropy backward for one (batch-block, pixel-tile) step.
#   dL/dz_k = -(w_loss / P) * p_k * (log p_k + H)   per pixel   (scale applied outside)
#   dL/dW   = sum_pixels dL/dz x^T,   dL/db = sum_pixels dL/dz
# ---------------------------------------------------------------------------
def make_fused_kernel(nb, t_pix, hw, ragged):
    """Refs:
      x_ref      : (nb, C, T)  input pixels, channels on sublanes, pixels on lanes
      w_ref      : (K, C)      1x1-conv weight
      b_ref      : (K, 1)      bias
      logits_ref : (nb, K, T)  pre-update logits (the module's return value)
      gw_ref     : (K, C)      this step's partial of sum dL/dz x^T   (unscaled)
      gb_ref     : (K, 1)      this step's partial of sum dL/dz       (unscaled)
    """

    def kernel(x_ref, w_ref, b_ref, logits_ref, gw_ref, gb_ref):
        w = w_ref[...]                                                   # (K, C)
        b = b_ref[...]                                                   # (K, 1)

        if ragged:
            # Only compiled in when H*W is not a multiple of the tile.  The boundary
            # tile's out-of-range lane columns hold undefined data; they must be zeroed
            # (in x AND in g) before they can reach the gradient matmul / reduction.
            t = pl.program_id(1)
            col = lax.broadcasted_iota(jnp.int32, (1, t_pix), 1) + t * t_pix
            valid = col < hw                                             # (1, T)

        def body(i, carry):
            gw_acc, gb_acc = carry
            x = x_ref[i]                                                 # (C, T)
            if ragged:
                x = jnp.where(valid, x, 0.0)

            z = jnp.dot(w, x, preferred_element_type=jnp.float32) + b   # (K, T)
            logits_ref[i] = z

            # Numerically-safe softmax / entropy over the class (sublane) axis.
            m = jnp.max(z, axis=0, keepdims=True)                        # (1, T)
            e = jnp.exp(z - m)
            s = jnp.sum(e, axis=0, keepdims=True)                        # (1, T)
            inv_s = pl.reciprocal(s, approx=False)   # one (1,T) recip, not (K,T) divides
            p = e * inv_s
            log_p = (z - m) - jnp.log(s)
            ent = -jnp.sum(p * log_p, axis=0, keepdims=True)             # (1, T)

            # Unscaled dL/dz; loss_weight / P is applied in the wrapper (no recompiles).
            g = -(p * (log_p + ent))                                     # (K, T)
            if ragged:
                g = jnp.where(valid, g, 0.0)

            # dW partial = g @ x^T : contract the lane/pixel axis directly (MXU
            # transposed-operand path; no explicit transpose of the big operands).
            gw_acc = gw_acc + lax.dot_general(
                g, x, (((1,), (1,)), ((), ())),
                preferred_element_type=jnp.float32)                      # (K, C)
            gb_acc = gb_acc + jnp.sum(g, axis=1, keepdims=True)          # (K, 1)
            return gw_acc, gb_acc

        gw0 = jnp.zeros(gw_ref.shape, jnp.float32)
        gb0 = jnp.zeros(gb_ref.shape, jnp.float32)
        gw, gb = lax.fori_loop(0, nb, body, (gw0, gb0), unroll=nb <= 4)
        gw_ref[...] = gw
        gb_ref[...] = gb

    return kernel


# ---------------------------------------------------------------------------
# forward_and_adapt / Tent wrapper (glue)
# ---------------------------------------------------------------------------
def forward_and_adapt(x_nchw, w, b, lr, loss_weight, *, max_lanes_per_step=None):
    """One adaptation step: fused forward + entropy-loss gradients, then SGD update.

    x_nchw: (N, C, H, W) float32 (PyTorch NCHW layout, consumed natively).
    w:      (K, C) 1x1-conv weight.     b: (K, 1) bias.
    Returns (pre-update logits as (N, K, H, W), new_w, new_b).
    """
    N, C, H, W = x_nchw.shape
    K = w.shape[0]
    HW = H * W
    P = N * HW

    nb, t_pix, num_tiles, ragged = _choose_tiling(N, C, K, HW, max_lanes_per_step)
    nbatch_blocks = N // nb

    x3 = x_nchw.reshape(N, C, HW)             # free reshape; no pad/slice HBM passes

    logits, gw_part, gb_part = pl.pallas_call(
        make_fused_kernel(nb, t_pix, HW, ragged),
        out_shape=(
            jax.ShapeDtypeStruct((N, K, HW), jnp.float32),                # logits
            jax.ShapeDtypeStruct((nbatch_blocks, num_tiles, K, C), jnp.float32),
            jax.ShapeDtypeStruct((nbatch_blocks, num_tiles, K, 1), jnp.float32),
        ),
        grid_spec=pltpu.PrefetchScalarGridSpec(
            num_scalar_prefetch=0,
            grid=(nbatch_blocks, num_tiles),
            in_specs=[
                pl.BlockSpec((nb, C, t_pix), lambda n, t: (n, 0, t)),
                pl.BlockSpec((K, C), lambda n, t: (0, 0)),
                pl.BlockSpec((K, 1), lambda n, t: (0, 0)),
            ],
            out_specs=(
                pl.BlockSpec((nb, K, t_pix), lambda n, t: (n, 0, t)),
                pl.BlockSpec((None, None, K, C), lambda n, t: (n, t, 0, 0)),
                pl.BlockSpec((None, None, K, 1), lambda n, t: (n, t, 0, 0)),
            ),
        ),
        compiler_params=pltpu.CompilerParams(
            # Per-(batch-block, tile) gradient partials mean no block stays resident
            # across grid steps -> both axes are independent / parallel (on v7x the
            # pixel-tile axis can be split across both TensorCores even when N == 1).
            dimension_semantics=("parallel", "parallel"),
            vmem_limit_bytes=VMEM_LIMIT_BYTES,
        ),
    )(x3, w, b)

    # Tiny (blocks, tiles, K, C)/(.., K, 1) reductions + scaling stay in XLA (negligible
    # traffic); keeping loss_weight/P out of the kernel avoids recompiles on changes.
    scale = jnp.float32(loss_weight) / jnp.float32(P)
    gw = scale * jnp.sum(gw_part, axis=(0, 1))      # (K, C)
    gb = scale * jnp.sum(gb_part, axis=(0, 1))      # (K, 1)

    w_new = w - lr * gw
    b_new = b - lr * gb

    outputs = logits.reshape(N, K, H, W)            # already NCHW; reshape is free
    return outputs, w_new, b_new


class TentPallas:
    """Tent adapts the model by entropy minimization on every forward."""

    def __init__(self, w, b, lr=1e-2, loss_weight=1.0, steps=1, episodic=False):
        assert steps > 0, "tent requires >= 1 step(s) to forward and update"
        self.w0, self.b0 = w, b          # saved state (copy_model_and_optimizer)
        self.w, self.b = w, b
        self.lr = lr
        self.loss_weight = loss_weight
        self.steps = steps
        self.episodic = episodic

    def reset(self):                     # load_model_and_optimizer
        self.w, self.b = self.w0, self.b0

    def forward(self, x, y=None, bounds=None):
        # y / bounds are accepted for API parity; entropy adaptation is unsupervised.
        if self.episodic:
            self.reset()
        outputs = None
        for _ in range(self.steps):
            outputs, self.w, self.b = forward_and_adapt(
                x, self.w, self.b, self.lr, self.loss_weight
            )
        return outputs


if __name__ == "__main__":
    N, C, H, W, K = 2, 4, 16, 16, 8
    key = jax.random.PRNGKey(0)
    kx, kw = jax.random.split(key)

    x = jax.random.normal(kx, (N, C, H, W), jnp.float32)
    y = jnp.zeros((N, H, W), jnp.int32)                 # labels (unused by Tent entropy)
    bounds = jnp.full((K,), 1.0 / K, jnp.float32)       # prior bounds (unused, see TODO)

    w0 = 0.1 * jax.random.normal(kw, (K, C), jnp.float32)   # conv weight (out, in)
    b0 = jnp.zeros((K, 1), jnp.float32)

    lr, loss_weight = 1e-2, 1.0
    tent = TentPallas(w0, b0, lr=lr, loss_weight=loss_weight, steps=1, episodic=False)
    out = tent.forward(x, y, bounds)
    out = jax.block_until_ready(out)

    # --- pure-JAX reference checks ---
    def ref_logits(w_, b_, xin):
        return jnp.einsum("kc,nchw->nkhw", w_, xin) + b_.reshape(1, K, 1, 1)

    def ref_grads(w_, b_, xin, wloss):
        def loss_fn(wp, bp):
            z = ref_logits(wp, bp, xin)
            p = jax.nn.softmax(z, axis=1)
            ent = -jnp.sum(p * jnp.log(p), axis=1)          # (N, H, W)
            return wloss * jnp.mean(ent)
        return jax.grad(loss_fn, argnums=(0, 1))(w_, b_)

    out_ref = ref_logits(w0, b0, x)
    assert out.shape == (N, K, H, W)
    assert jnp.allclose(out, out_ref, atol=1e-4), "forward logits mismatch"

    gw_ref, gb_ref = ref_grads(w0, b0, x, loss_weight)
    assert jnp.allclose(tent.w, w0 - lr * gw_ref, atol=1e-4), "adapted W mismatch"
    assert jnp.allclose(tent.b, b0 - lr * gb_ref, atol=1e-4), "adapted b mismatch"

    # --- also exercise the multi-tile / ragged-boundary path (H*W not a tile multiple)
    #     by forcing a small per-step lane budget ---
    H2 = W2 = 18                                             # HW = 324 -> 3 tiles of 128
    x2 = jax.random.normal(jax.random.PRNGKey(1), (1, C, H2, W2), jnp.float32)
    out2, w2, b2 = forward_and_adapt(x2, w0, b0, lr, loss_weight, max_lanes_per_step=128)
    out2 = jax.block_until_ready(out2)
    assert jnp.allclose(out2, ref_logits(w0, b0, x2), atol=1e-4), "ragged logits mismatch"
    gw2, gb2 = ref_grads(w0, b0, x2, loss_weight)
    assert jnp.allclose(w2, w0 - lr * gw2, atol=1e-4), "ragged adapted W mismatch"
    assert jnp.allclose(b2, b0 - lr * gb2, atol=1e-4), "ragged adapted b mismatch"

    print("KERNEL_OK")
</pallas_src>

<mosaic_0001>
module attributes {stable_mosaic.version = 11 : i64} {
  func.func @kernel(%arg0: i32, %arg1: i32, %arg2: memref<2x4x256xf32, #tpu.memory_space<vmem>>, %arg3: memref<8x4xf32, #tpu.memory_space<vmem>>, %arg4: memref<8x1xf32, #tpu.memory_space<vmem>>, %arg5: memref<2x8x256xf32, #tpu.memory_space<vmem>>, %arg6: memref<1x1x8x4xf32, #tpu.memory_space<vmem>>, %arg7: memref<1x1x8x1xf32, #tpu.memory_space<vmem>>) attributes {dimension_semantics = [#tpu.dimension_semantics<parallel>, #tpu.dimension_semantics<parallel>], iteration_bounds = array<i64: 1, 1>, scalar_prefetch = 0 : i64, scratch_operands = 0 : i64, tpu.core_type = #tpu.core_type<tc>, window_params = [{transform_indices = @transform_0, window_bounds = array<i64: 2, 4, 256>}, {pipeline_mode = #tpu.pipeline_mode<synchronous>, transform_indices = @transform_1, window_bounds = array<i64: 8, 4>}, {pipeline_mode = #tpu.pipeline_mode<synchronous>, transform_indices = @transform_2, window_bounds = array<i64: 8, 1>}, {transform_indices = @transform_3, window_bounds = array<i64: 2, 8, 256>}, {transform_indices = @transform_4, window_bounds = array<i64: 1, 1, 8, 4>}, {transform_indices = @transform_5, window_bounds = array<i64: 1, 1, 8, 1>}]} {
    %c0 = arith.constant 0 : index
    %c0_0 = arith.constant 0 : index
    %0 = vector.load %arg3[%c0, %c0_0] : memref<8x4xf32, #tpu.memory_space<vmem>>, vector<8x4xf32>
    %c0_1 = arith.constant 0 : index
    %c0_2 = arith.constant 0 : index
    %1 = vector.load %arg4[%c0_1, %c0_2] : memref<8x1xf32, #tpu.memory_space<vmem>>, vector<8x1xf32>
    %cst = arith.constant 0.000000e+00 : f32
    %2 = vector.broadcast %cst : f32 to vector<8x4xf32>
    %cst_3 = arith.constant 0.000000e+00 : f32
    %3 = vector.broadcast %cst_3 : f32 to vector<8x1xf32>
    %c0_i32 = arith.constant 0 : i32
    %4 = arith.index_cast %c0_i32 : i32 to index
    %c0_4 = arith.constant 0 : index
    %c0_5 = arith.constant 0 : index
    %5 = vector.load %arg2[%4, %c0_4, %c0_5] : memref<2x4x256xf32, #tpu.memory_space<vmem>>, vector<1x4x256xf32>
    %6 = vector.shape_cast %5 : vector<1x4x256xf32> to vector<4x256xf32>
    %cst_6 = arith.constant dense<0.000000e+00> : vector<8x256xf32>
    %7 = tpu.matmul %0, %6, %cst_6 {dimension_numbers = #tpu.dot_dimension_numbers<[1], [0], [0], [1], [0, 0, 1, 1], [], []>} : vector<8x4xf32>, vector<4x256xf32>, vector<8x256xf32> -> vector<8x256xf32>
    %8 = vector.broadcast %1 : vector<8x1xf32> to vector<8x256xf32>
    %9 = arith.addf %7, %8 : vector<8x256xf32>
    %10 = arith.index_cast %c0_i32 : i32 to index
    %c0_7 = arith.constant 0 : index
    %c0_8 = arith.constant 0 : index
    %11 = vector.load %arg5[%10, %c0_7, %c0_8] : memref<2x8x256xf32, #tpu.memory_space<vmem>>, vector<1x8x256xf32>
    %12 = vector.shape_cast %11 : vector<1x8x256xf32> to vector<8x256xf32>
    %13 = vector.shape_cast %9 : vector<8x256xf32> to vector<1x8x256xf32>
    tpu.vector_store %arg5[%10, %c0_7, %c0_8], %13 {strides = array<i32>} : memref<2x8x256xf32, #tpu.memory_space<vmem>>, vector<1x8x256xf32>,
    %cst_9 = arith.constant dense<0xFF800000> : vector<256xf32>
    %14 = vector.multi_reduction <maximumf>, %9, %cst_9 [0] : vector<8x256xf32> to vector<256xf32>
    %15 = vector.shape_cast %14 : vector<256xf32> to vector<1x256xf32>
    %16 = vector.broadcast %15 : vector<1x256xf32> to vector<8x256xf32>
    %17 = arith.subf %9, %16 : vector<8x256xf32>
    %18 = math.exp %17 : vector<8x256xf32>
    %cst_10 = arith.constant dense<0.000000e+00> : vector<256xf32>
    %19 = vector.multi_reduction <add>, %18, %cst_10 [0] : vector<8x256xf32> to vector<256xf32>
    %20 = vector.shape_cast %19 : vector<256xf32> to vector<1x256xf32>
    %21 = tpu.reciprocal %20 : vector<1x256xf32> -> vector<1x256xf32>
    %22 = vector.broadcast %21 : vector<1x256xf32> to vector<8x256xf32>
    %23 = arith.mulf %18, %22 : vector<8x256xf32>
    %24 = vector.broadcast %15 : vector<1x256xf32> to vector<8x256xf32>
    %25 = arith.subf %9, %24 : vector<8x256xf32>
    %26 = math.log %20 : vector<1x256xf32>
    %27 = vector.broadcast %26 : vector<1x256xf32> to vector<8x256xf32>
    %28 = arith.subf %25, %27 : vector<8x256xf32>
    %29 = arith.mulf %23, %28 : vector<8x256xf32>
    %cst_11 = arith.constant dense<0.000000e+00> : vector<256xf32>
    %30 = vector.multi_reduction <add>, %29, %cst_11 [0] : vector<8x256xf32> to vector<256xf32>
    %31 = vector.shape_cast %30 : vector<256xf32> to vector<1x256xf32>
    %cst_12 = arith.constant 0.000000e+00 : f32
    %32 = vector.broadcast %cst_12 : f32 to vector<1x256xf32>
    %33 = arith.subf %32, %31 : vector<1x256xf32>
    %34 = vector.broadcast %33 : vector<1x256xf32> to vector<8x256xf32>
    %35 = arith.addf %28, %34 : vector<8x256xf32>
    %36 = arith.mulf %23, %35 : vector<8x256xf32>
    %cst_13 = arith.constant 0.000000e+00 : f32
    %37 = vector.broadcast %cst_13 : f32 to vector<8x256xf32>
    %38 = arith.subf %37, %36 : vector<8x256xf32>
    %cst_14 = arith.constant dense<0.000000e+00> : vector<8x4xf32>
    %39 = tpu.matmul %38, %6, %cst_14 {dimension_numbers = #tpu.dot_dimension_numbers<[1], [1], [0], [0], [0, 0, 1, 0], [], []>} : vector<8x256xf32>, vector<4x256xf32>, vector<8x4xf32> -> vector<8x4xf32>
    %40 = arith.addf %2, %39 : vector<8x4xf32>
    %cst_15 = arith.constant dense<0.000000e+00> : vector<8xf32>
    %41 = vector.multi_reduction <add>, %38, %cst_15 [1] : vector<8x256xf32> to vector<8xf32>
    %42 = vector.shape_cast %41 : vector<8xf32> to vector<8x1xf32>
    %43 = arith.addf %3, %42 : vector<8x1xf32>
    %c1_i32 = arith.constant 1 : i32
    %44 = arith.index_cast %c1_i32 : i32 to index
    %c0_16 = arith.constant 0 : index
    %c0_17 = arith.constant 0 : index
    %45 = vector.load %arg2[%44, %c0_16, %c0_17] : memref<2x4x256xf32, #tpu.memory_space<vmem>>, vector<1x4x256xf32>
    %46 = vector.shape_cast %45 : vector<1x4x256xf32> to vector<4x256xf32>
    %cst_18 = arith.constant dense<0.000000e+00> : vector<8x256xf32>
    %47 = tpu.matmul %0, %46, %cst_18 {dimension_numbers = #tpu.dot_dimension_numbers<[1], [0], [0], [1], [0, 0, 1, 1], [], []>} : vector<8x4xf32>, vector<4x256xf32>, vector<8x256xf32> -> vector<8x256xf32>
    %48 = vector.broadcast %1 : vector<8x1xf32> to vector<8x256xf32>
    %49 = arith.addf %47, %48 : vector<8x256xf32>
    %50 = arith.index_cast %c1_i32 : i32 to index
    %c0_19 = arith.constant 0 : index
    %c0_20 = arith.constant 0 : index
    %51 = vector.load %arg5[%50, %c0_19, %c0_20] : memref<2x8x256xf32, #tpu.memory_space<vmem>>, vector<1x8x256xf32>
    %52 = vector.shape_cast %51 : vector<1x8x256xf32> to vector<8x256xf32>
    %53 = vector.shape_cast %49 : vector<8x256xf32> to vector<1x8x256xf32>
    tpu.vector_store %arg5[%50, %c0_19, %c0_20], %53 {strides = array<i32>} : memref<2x8x256xf32, #tpu.memory_space<vmem>>, vector<1x8x256xf32>,
    %cst_21 = arith.constant dense<0xFF800000> : vector<256xf32>
    %54 = vector.multi_reduction <maximumf>, %49, %cst_21 [0] : vector<8x256xf32> to vector<256xf32>
    %55 = vector.shape_cast %54 : vector<256xf32> to vector<1x256xf32>
    %56 = vector.broadcast %55 : vector<1x256xf32> to vector<8x256xf32>
    %57 = arith.subf %49, %56 : vector<8x256xf32>
    %58 = math.exp %57 : vector<8x256xf32>
    %cst_22 = arith.constant dense<0.000000e+00> : vector<256xf32>
    %59 = vector.multi_reduction <add>, %58, %cst_22 [0] : vector<8x256xf32> to vector<256xf32>
    %60 = vector.shape_cast %59 : vector<256xf32> to vector<1x256xf32>
    %61 = tpu.reciprocal %60 : vector<1x256xf32> -> vector<1x256xf32>
    %62 = vector.broadcast %61 : vector<1x256xf32> to vector<8x256xf32>
    %63 = arith.mulf %58, %62 : vector<8x256xf32>
    %64 = vector.broadcast %55 : vector<1x256xf32> to vector<8x256xf32>
    %65 = arith.subf %49, %64 : vector<8x256xf32>
    %66 = math.log %60 : vector<1x256xf32>
    %67 = vector.broadcast %66 : vector<1x256xf32> to vector<8x256xf32>
    %68 = arith.subf %65, %67 : vector<8x256xf32>
    %69 = arith.mulf %63, %68 : vector<8x256xf32>
    %cst_23 = arith.constant dense<0.000000e+00> : vector<256xf32>
    %70 = vector.multi_reduction <add>, %69, %cst_23 [0] : vector<8x256xf32> to vector<256xf32>
    %71 = vector.shape_cast %70 : vector<256xf32> to vector<1x256xf32>
    %cst_24 = arith.constant 0.000000e+00 : f32
    %72 = vector.broadcast %cst_24 : f32 to vector<1x256xf32>
    %73 = arith.subf %72, %71 : vector<1x256xf32>
    %74 = vector.broadcast %73 : vector<1x256xf32> to vector<8x256xf32>
    %75 = arith.addf %68, %74 : vector<8x256xf32>
    %76 = arith.mulf %63, %75 : vector<8x256xf32>
    %cst_25 = arith.constant 0.000000e+00 : f32
    %77 = vector.broadcast %cst_25 : f32 to vector<8x256xf32>
    %78 = arith.subf %77, %76 : vector<8x256xf32>
    %cst_26 = arith.constant dense<0.000000e+00> : vector<8x4xf32>
    %79 = tpu.matmul %78, %46, %cst_26 {dimension_numbers = #tpu.dot_dimension_numbers<[1], [1], [0], [0], [0, 0, 1, 0], [], []>} : vector<8x256xf32>, vector<4x256xf32>, vector<8x4xf32> -> vector<8x4xf32>
    %80 = arith.addf %40, %79 : vector<8x4xf32>
    %cst_27 = arith.constant dense<0.000000e+00> : vector<8xf32>
    %81 = vector.multi_reduction <add>, %78, %cst_27 [1] : vector<8x256xf32> to vector<8xf32>
    %82 = vector.shape_cast %81 : vector<8xf32> to vector<8x1xf32>
    %83 = arith.addf %43, %82 : vector<8x1xf32>
    %c2_i32 = arith.constant 2 : i32
    %c0_28 = arith.constant 0 : index
    %c0_29 = arith.constant 0 : index
    %c0_30 = arith.constant 0 : index
    %c0_31 = arith.constant 0 : index
    %84 = vector.load %arg6[%c0_28, %c0_29, %c0_30, %c0_31] : memref<1x1x8x4xf32, #tpu.memory_space<vmem>>, vector<1x1x8x4xf32>
    %85 = vector.shape_cast %84 : vector<1x1x8x4xf32> to vector<8x4xf32>
    %86 = vector.shape_cast %80 : vector<8x4xf32> to vector<1x1x8x4xf32>
    tpu.vector_store %arg6[%c0_28, %c0_29, %c0_30, %c0_31], %86 {strides = array<i32>} : memref<1x1x8x4xf32, #tpu.memory_space<vmem>>, vector<1x1x8x4xf32>,
    %c0_32 = arith.constant 0 : index
    %c0_33 = arith.constant 0 : index
    %c0_34 = arith.constant 0 : index
    %c0_35 = arith.constant 0 : index
    %87 = vector.load %arg7[%c0_32, %c0_33, %c0_34, %c0_35] : memref<1x1x8x1xf32, #tpu.memory_space<vmem>>, vector<1x1x8x1xf32>
    %88 = vector.shape_cast %87 : vector<1x1x8x1xf32> to vector<8x1xf32>
    %89 = vector.shape_cast %83 : vector<8x1xf32> to vector<1x1x8x1xf32>
    tpu.vector_store %arg7[%c0_32, %c0_33, %c0_34, %c0_35], %89 {strides = array<i32>} : memref<1x1x8x1xf32, #tpu.memory_space<vmem>>, vector<1x1x8x1xf32>,
    return
  }
  func.func @transform_0(%arg0: i32, %arg1: i32) -> (i32, i32, i32) {
    %c0_i32 = arith.constant 0 : i32
    %c0_i32_0 = arith.constant 0 : i32
    return %arg0, %c0_i32, %arg1 : i32, i32, i32
  }
  func.func @transform_1(%arg0: i32, %arg1: i32) -> (i32, i32) {
    %c0_i32 = arith.constant 0 : i32
    %c0_i32_0 = arith.constant 0 : i32
    %c0_i32_1 = arith.constant 0 : i32
    return %c0_i32, %c0_i32_0 : i32, i32
  }
  func.func @transform_2(%arg0: i32, %arg1: i32) -> (i32, i32) {
    %c0_i32 = arith.constant 0 : i32
    %c0_i32_0 = arith.constant 0 : i32
    %c0_i32_1 = arith.constant 0 : i32
    return %c0_i32, %c0_i32_0 : i32, i32
  }
  func.func @transform_3(%arg0: i32, %arg1: i32) -> (i32, i32, i32) {
    %c0_i32 = arith.constant 0 : i32
    %c0_i32_0 = arith.constant 0 : i32
    return %arg0, %c0_i32, %arg1 : i32, i32, i32
  }
  func.func @transform_4(%arg0: i32, %arg1: i32) -> (i32, i32, i32, i32) {
    %c0_i32 = arith.constant 0 : i32
    %c0_i32_0 = arith.constant 0 : i32
    %c0_i32_1 = arith.constant 0 : i32
    return %arg0, %arg1, %c0_i32, %c0_i32_0 : i32, i32, i32, i32
  }
  func.func @transform_5(%arg0: i32, %arg1: i32) -> (i32, i32, i32, i32) {
    %c0_i32 = arith.constant 0 : i32
    %c0_i32_0 = arith.constant 0 : i32
    %c0_i32_1 = arith.constant 0 : i32
    return %arg0, %arg1, %c0_i32, %c0_i32_0 : i32, i32, i32, i32
  }
}

</mosaic_0001>

<llo_original>
// kernel: tpu_custom_call.1
$region0: #{tpu_custom_call.1}
  #allocation0 [shape = 'u32[]', space=smem, size = 0x4, offset = 0x4, fixed_abs, tag = 'smem constant byte address 0x4 - core index']
  #allocation1 [shape = 'u32[144,128]{1,0:T(1,128)}', space=vmem, size = 0x12000, scoped, tag = 'internal scratch']
  %s0 = inlined_call_operand.vmem [shape: f32[2,4,256], index: 0, kind: input, shape index: {}]
  %s1 = inlined_call_operand.vmem [shape: f32[8,4], index: 1, kind: input, shape index: {}]
  %s2 = inlined_call_operand.vmem [shape: f32[8,1], index: 2, kind: input, shape index: {}]
  %s3 = inlined_call_operand.hbm [shape: f32[2,8,256], index: 3, kind: output, shape index: {0}]
  %s4 = inlined_call_operand.vmem [shape: f32[1,1,8,4], index: 4, kind: output, shape index: {1}]
  %s5 = inlined_call_operand.vmem [shape: f32[1,1,8,1], index: 5, kind: output, shape index: {2}]
  %6 = xla_tuple %s3, %s4, %s5
  %s7 = sld [smem:[#allocation0]]
  $region38: #{tpu_custom_call.1} parent=0
    _
  %s9 = ssub.s32 1, %s7
  %s10 = scalar_select 0, %s9, %s7
  $region1: #{tpu_custom_call.1} parent=0
    #allocation2 [shape = 'u8[16384]{0}', space=vmem, size = 0x4000, scoped, tag = 'output window, operand 0, single buffered']
    #allocation3 [shape = 's32[1]{0}', space=sflag, size = 0x4, scoped, tag = 'scoped memory for tpu_custom_call.1']
    %11 = vsyncpa [#allocation3], 0
    // Predicated region
    $region2: #{tpu_custom_call.1} parent=1 // pred_check
      _
    $region3: #{tpu_custom_call.1} parent=1 // pred_check_branch
      %13 = sbr.rel (0) target = $region5
    $region4: #{tpu_custom_call.1} parent=1 // pred_region
      _
    $region5: #{tpu_custom_call.1} parent=1 // pred_fallthru
      _
    // Predicated region
    $region6: #{tpu_custom_call.1} parent=1 // pred_check
      _
    $region7: #{tpu_custom_call.1} parent=1 // pred_check_branch
      %15 = sbr.rel (0) target = $region9
    $region8: #{tpu_custom_call.1} parent=1 // pred_region
      _
    $region9: #{tpu_custom_call.1} parent=1 // pred_fallthru
      _
    // Predicated region
    $region10: #{tpu_custom_call.1} parent=1 // pred_check
      _
    $region11: #{tpu_custom_call.1} parent=1 // pred_check_branch
      %17 = sbr.rel (0) target = $region13
    $region12: #{tpu_custom_call.1} parent=1 // pred_region
      _
    $region13: #{tpu_custom_call.1} parent=1 // pred_fallthru
      _
    %v18 = vld [vmem:[%s1] sm:$0xff]
    %v19 = vld [vmem:[%s2] sm:$0xff]
    %v20 = vld [vmem:[%s0] sm:$0xff]
    %22 = vset.pattern.permute.xlu0 0
    %23 = vperm.xlu0 %22, %v19
    %v24 = vpop.permute.xlu0 %23
    %v27 = vcombine.high %v20, %v20
    %vm28 = vcmask 31744
    %v30 = vsel %vm28, %v18, 0
    %vm32 = vcmask 1043456
    %v33 = vsel %vm32, %v20, 0
    %v35 = vsel %vm32, %v27, 0
    %37 = vmatprep.subr.mxu0 0.0
    %38 = vmatpush1.msra.mxu0 0.0
    %39 = vmatprep.subr.mxu0 0.0
    %40 = vmatpush1.msra.mxu0 0.0
    %41 = vmatprep.subr.mxu0 0.0
    %42 = vmatpush1.msra.mxu0 0.0
    %43 = vmatprep.subr.mxu0 0.0
    %44 = vmatpush1.msra.mxu0 0.0
    %45 = vmatprep.subr.mxu0 0.0
    %46 = vmatpush1.msra.mxu0 0.0
    %47 = vmatprep.subr.mxu0 0.0
    %48 = vmatpush1.msra.mxu0 0.0
    %49 = vmatprep.subr.mxu0 0.0
    %50 = vmatpush1.msra.mxu0 0.0
    %51 = vmatprep.subr.mxu0 0.0
    %52 = vmatpush1.msra.mxu0 0.0
    %53 = vmatprep.subr.mxu0 0.0
    %54 = vmatpush1.msra.mxu0 0.0
    %55 = vmatprep.subr.mxu0 0.0
    %56 = vmatpush1.msra.mxu0 0.0
    %57 = vmatprep.subr.mxu0 0.0
    %58 = vmatpush1.msra.mxu0 0.0
    %59 = vmatprep.subr.mxu0 0.0
    %60 = vmatpush1.msra.mxu0 0.0
    %61 = vmatprep.subr.mxu0 0.0
    %62 = vmatpush1.msra.mxu0 0.0
    %63 = vmatprep.subr.mxu0 0.0
    %64 = vmatpush1.msra.mxu0 0.0
    %65 = vmatprep.subr.mxu0 0.0
    %66 = vmatpush1.msra.mxu0 0.0
    %67 = vmatprep.subr.mxu0 %v35
    %68 = vmatpush1.msra.mxu0 %v33
    %69 = vmatprep.subr.mxu0 0.0
    %70 = vmatpush2.msra.mxu0 0.0
    %71 = vmatprep.subr.mxu0 0.0
    %72 = vmatpush2.msra.mxu0 0.0
    %73 = vmatprep.subr.mxu0 0.0
    %74 = vmatpush2.msra.mxu0 0.0
    %75 = vmatprep.subr.mxu0 0.0
    %76 = vmatpush2.msra.mxu0 0.0
    %77 = vmatprep.subr.mxu0 0.0
    %78 = vmatpush2.msra.mxu0 0.0
    %79 = vmatprep.subr.mxu0 0.0
    %80 = vmatpush2.msra.mxu0 0.0
    %81 = vmatprep.subr.mxu0 0.0
    %82 = vmatpush2.msra.mxu0 0.0
    %83 = vmatprep.subr.mxu0 0.0
    %84 = vmatpush2.msra.mxu0 0.0
    %85 = vmatprep.subr.mxu0 0.0
    %86 = vmatpush2.msra.mxu0 0.0
    %87 = vmatprep.subr.mxu0 0.0
    %88 = vmatpush2.msra.mxu0 0.0
    %89 = vmatprep.subr.mxu0 0.0
    %90 = vmatpush2.msra.mxu0 0.0
    %91 = vmatprep.subr.mxu0 0.0
    %92 = vmatpush2.msra.mxu0 0.0
    %93 = vmatprep.subr.mxu0 0.0
    %94 = vmatpush2.msra.mxu0 0.0
    %95 = vmatprep.subr.mxu0 0.0
    %96 = vmatpush2.msra.mxu0 0.0
    %97 = vmatprep.subr.mxu0 0.0
    %98 = vmatpush2.msra.mxu0 0.0
    %99 = vmatprep.subr.mxu0 0.0
    %100 = vmatpush2.msra.mxu0 0.0
    %101 = vmatprep.mubr.f32.mxu0 0.0
    %102 = vmatmul.mubr.f32.gmra.mxu0 %v30
    %v103 = vpop.f32.mrf.mxu0
    %v104 = vadd.f32 %v24, %v103
    %v105 = vpop.f32.mrf.mxu0
    %v106 = vadd.f32 %v24, %v105
    %107 = vdwg.mxu0
    %108 = vst [vmem:[#allocation2] sm:$0xff] %v104
    %109 = vst [vmem:[#allocation2 + $0x8] sm:$0xff] %v106
    %v110 = vrot.slane %v104, 4
    %v111 = vmax.f32 %v104, %v110
    %v112 = vrot.slane %v111, 2
    %v113 = vmax.f32 %v111, %v112
    %v114 = vrot.slane %v113, 1
    %v115 = vmax.f32 %v113, %v114
    %v116 = vrot.slane %v106, 4
    %v117 = vmax.f32 %v106, %v116
    %v118 = vrot.slane %v117, 2
    %v119 = vmax.f32 %v117, %v118
    %v120 = vrot.slane %v119, 1
    %v121 = vmax.f32 %v119, %v120
    %v122 = vsub.f32 %v104, %v115
    %v123 = vsub.f32 %v106, %v121
    %v124 = vmul.f32 %v122, 1.442695
    %v125 = vpow.pop %v124
    %v126 = vmul.f32 %v123, 1.442695
    %v127 = vpow.pop %v126
    %v128 = vrot.slane %v125, 4
    %v129 = vadd.f32 %v125, %v128
    %v130 = vrot.slane %v129, 2
    %v131 = vadd.f32 %v129, %v130
    %v132 = vrot.slane %v131, 1
    %v133 = vadd.f32 %v131, %v132
    %v134 = vrot.slane %v127, 4
    %v135 = vadd.f32 %v127, %v134
    %v136 = vrot.slane %v135, 2
    %v137 = vadd.f32 %v135, %v136
    %v138 = vrot.slane %v137, 1
    %v139 = vadd.f32 %v137, %v138
    %v140 = vrcp.pop %v133
    %v141 = vrcp.pop %v139
    %v142 = vmul.f32 %v125, %v140
    %v143 = vmul.f32 %v127, %v141
    %v144 = vlog2.pop %v133
    %v145 = vmul.f32 %v144, 0.6931472
    %v146 = vlog2.pop %v139
    %v147 = vmul.f32 %v146, 0.6931472
    %v148 = vsub.f32 %v122, %v145
    %v149 = vsub.f32 %v123, %v147
    %v150 = vmul.f32 %v142, %v148
    %v151 = vmul.f32 %v143, %v149
    %v152 = vrot.slane %v150, 4
    %v153 = vadd.f32 %v150, %v152
    %v154 = vrot.slane %v153, 2
    %v155 = vadd.f32 %v153, %v154
    %v156 = vrot.slane %v155, 1
    %v157 = vadd.f32 %v155, %v156
    %v158 = vrot.slane %v151, 4
    %v159 = vadd.f32 %v151, %v158
    %v160 = vrot.slane %v159, 2
    %v161 = vadd.f32 %v159, %v160
    %v162 = vrot.slane %v161, 1
    %v163 = vadd.f32 %v161, %v162
    %v164 = vsub.f32 0.0, %v157
    %v165 = vsub.f32 0.0, %v163
    %v166 = vadd.f32 %v148, %v164
    %v167 = vadd.f32 %v149, %v165
    %v168 = vmul.f32 %v142, %v166
    %v169 = vmul.f32 %v143, %v167
    %v170 = vsub.f32 0.0, %v168
    %v171 = vsub.f32 0.0, %v169
    %v172 = vadd.f32 %v170, %v171
    %173 = vadd.xlane.f32.xlu0 %v172
    %v174 = vpop.xlane.xlu0 %173
    %v175 = vadd.f32 %v174, 0.0
    %s176 = scalar_lea.vmem %s0, 8
    %v177 = vld [vmem:[%s176] sm:$0xff]
    %v179 = vcombine.high %v177, %v177
    %v180 = vsel %vm32, %v177, 0
    %v182 = vsel %vm32, %v179, 0
    %184 = vmatprep.subr.mxu0 0.0
    %185 = vmatpush1.msra.mxu0 0.0
    %186 = vmatprep.subr.mxu0 0.0
    %187 = vmatpush1.msra.mxu0 0.0
    %188 = vmatprep.subr.mxu0 0.0
    %189 = vmatpush1.msra.mxu0 0.0
    %190 = vmatprep.subr.mxu0 0.0
    %191 = vmatpush1.msra.mxu0 0.0
    %192 = vmatprep.subr.mxu0 0.0
    %193 = vmatpush1.msra.mxu0 0.0
    %194 = vmatprep.subr.mxu0 0.0
    %195 = vmatpush1.msra.mxu0 0.0
    %196 = vmatprep.subr.mxu0 0.0
    %197 = vmatpush1.msra.mxu0 0.0
    %198 = vmatprep.subr.mxu0 0.0
    %199 = vmatpush1.msra.mxu0 0.0
    %200 = vmatprep.subr.mxu0 0.0
    %201 = vmatpush1.msra.mxu0 0.0
    %202 = vmatprep.subr.mxu0 0.0
    %203 = vmatpush1.msra.mxu0 0.0
    %204 = vmatprep.subr.mxu0 0.0
    %205 = vmatpush1.msra.mxu0 0.0
    %206 = vmatprep.subr.mxu0 0.0
    %207 = vmatpush1.msra.mxu0 0.0
    %208 = vmatprep.subr.mxu0 0.0
    %209 = vmatpush1.msra.mxu0 0.0
    %210 = vmatprep.subr.mxu0 0.0
    %211 = vmatpush1.msra.mxu0 0.0
    %212 = vmatprep.subr.mxu0 0.0
    %213 = vmatpush1.msra.mxu0 0.0
    %214 = vmatprep.subr.mxu0 %v182
    %215 = vmatpush1.msra.mxu0 %v180
    %216 = vmatprep.subr.mxu0 0.0
    %217 = vmatpush2.msra.mxu0 0.0
    %218 = vmatprep.subr.mxu0 0.0
    %219 = vmatpush2.msra.mxu0 0.0
    %220 = vmatprep.subr.mxu0 0.0
    %221 = vmatpush2.msra.mxu0 0.0
    %222 = vmatprep.subr.mxu0 0.0
    %223 = vmatpush2.msra.mxu0 0.0
    %224 = vmatprep.subr.mxu0 0.0
    %225 = vmatpush2.msra.mxu0 0.0
    %226 = vmatprep.subr.mxu0 0.0
    %227 = vmatpush2.msra.mxu0 0.0
    %228 = vmatprep.subr.mxu0 0.0
    %229 = vmatpush2.msra.mxu0 0.0
    %230 = vmatprep.subr.mxu0 0.0
    %231 = vmatpush2.msra.mxu0 0.0
    %232 = vmatprep.subr.mxu0 0.0
    %233 = vmatpush2.msra.mxu0 0.0
    %234 = vmatprep.subr.mxu0 0.0
    %235 = vmatpush2.msra.mxu0 0.0
    %236 = vmatprep.subr.mxu0 0.0
    %237 = vmatpush2.msra.mxu0 0.0
    %238 = vmatprep.subr.mxu0 0.0
    %239 = vmatpush2.msra.mxu0 0.0
    %240 = vmatprep.subr.mxu0 0.0
    %241 = vmatpush2.msra.mxu0 0.0
    %242 = vmatprep.subr.mxu0 0.0
    %243 = vmatpush2.msra.mxu0 0.0
    %244 = vmatprep.subr.mxu0 0.0
    %245 = vmatpush2.msra.mxu0 0.0
    %246 = vmatprep.subr.mxu0 0.0
    %247 = vmatpush2.msra.mxu0 0.0
    %248 = vmatprep.mubr.f32.mxu0 0.0
    %249 = vmatmul.mubr.f32.gmra.mxu0 %v30
    %v250 = vpop.f32.mrf.mxu0
    %v251 = vadd.f32 %v24, %v250
    %v252 = vpop.f32.mrf.mxu0
    %v253 = vadd.f32 %v24, %v252
    %254 = vdwg.mxu0
    %s255 = scalar_lea.vmem [#allocation2], 16
    %256 = vst [vmem:[%s255] sm:$0xff] %v251
    %257 = vst [vmem:[%s255 + $0x8] sm:$0xff] %v253
    %v258 = vrot.slane %v251, 4
    %v259 = vmax.f32 %v251, %v258
    %v260 = vrot.slane %v259, 2
    %v261 = vmax.f32 %v259, %v260
    %v262 = vrot.slane %v261, 1
    %v263 = vmax.f32 %v261, %v262
    %v264 = vrot.slane %v253, 4
    %v265 = vmax.f32 %v253, %v264
    %v266 = vrot.slane %v265, 2
    %v267 = vmax.f32 %v265, %v266
    %v268 = vrot.slane %v267, 1
    %v269 = vmax.f32 %v267, %v268
    %v270 = vsub.f32 %v251, %v263
    %v271 = vsub.f32 %v253, %v269
    %v272 = vmul.f32 %v270, 1.442695
    %v273 = vpow.pop %v272
    %v274 = vmul.f32 %v271, 1.442695
    %v275 = vpow.pop %v274
    %v276 = vrot.slane %v273, 4
    %v277 = vadd.f32 %v273, %v276
    %v278 = vrot.slane %v277, 2
    %v279 = vadd.f32 %v277, %v278
    %v280 = vrot.slane %v279, 1
    %v281 = vadd.f32 %v279, %v280
    %v282 = vrot.slane %v275, 4
    %v283 = vadd.f32 %v275, %v282
    %v284 = vrot.slane %v283, 2
    %v285 = vadd.f32 %v283, %v284
    %v286 = vrot.slane %v285, 1
    %v287 = vadd.f32 %v285, %v286
    %v288 = vrcp.pop %v281
    %v289 = vrcp.pop %v287
    %v290 = vmul.f32 %v273, %v288
    %v291 = vmul.f32 %v275, %v289
    %v292 = vlog2.pop %v281
    %v293 = vmul.f32 %v292, 0.6931472
    %v294 = vlog2.pop %v287
    %v295 = vmul.f32 %v294, 0.6931472
    %v296 = vsub.f32 %v270, %v293
    %v297 = vsub.f32 %v271, %v295
    %v298 = vmul.f32 %v290, %v296
    %v299 = vmul.f32 %v291, %v297
    %v300 = vrot.slane %v298, 4
    %v301 = vadd.f32 %v298, %v300
    %v302 = vrot.slane %v301, 2
    %v303 = vadd.f32 %v301, %v302
    %v304 = vrot.slane %v303, 1
    %v305 = vadd.f32 %v303, %v304
    %v306 = vrot.slane %v299, 4
    %v307 = vadd.f32 %v299, %v306
    %v308 = vrot.slane %v307, 2
    %v309 = vadd.f32 %v307, %v308
    %v310 = vrot.slane %v309, 1
    %v311 = vadd.f32 %v309, %v310
    %v312 = vsub.f32 0.0, %v305
    %v313 = vsub.f32 0.0, %v311
    %v314 = vadd.f32 %v296, %v312
    %v315 = vadd.f32 %v297, %v313
    %v316 = vmul.f32 %v290, %v314
    %v317 = vmul.f32 %v291, %v315
    %v318 = vsub.f32 0.0, %v316
    %v319 = vsub.f32 0.0, %v317
    %321 = vmatprep.subr.mxu0 0.0
    %322 = vmatpush1.xpose.msra.mxu0 0.0
    %323 = vmatprep.subr.mxu0 0.0
    %324 = vmatpush1.xpose.msra.mxu0 0.0
    %325 = vmatprep.subr.mxu0 0.0
    %326 = vmatpush1.xpose.msra.mxu0 0.0
    %327 = vmatprep.subr.mxu0 0.0
    %328 = vmatpush1.xpose.msra.mxu0 0.0
    %329 = vmatprep.subr.mxu0 0.0
    %330 = vmatpush1.xpose.msra.mxu0 0.0
    %331 = vmatprep.subr.mxu0 0.0
    %332 = vmatpush1.xpose.msra.mxu0 0.0
    %333 = vmatprep.subr.mxu0 0.0
    %334 = vmatpush1.xpose.msra.mxu0 0.0
    %335 = vmatprep.subr.mxu0 0.0
    %336 = vmatpush1.xpose.msra.mxu0 0.0
    %337 = vmatprep.subr.mxu0 0.0
    %338 = vmatpush1.xpose.msra.mxu0 0.0
    %339 = vmatprep.subr.mxu0 0.0
    %340 = vmatpush1.xpose.msra.mxu0 0.0
    %341 = vmatprep.subr.mxu0 0.0
    %342 = vmatpush1.xpose.msra.mxu0 0.0
    %343 = vmatprep.subr.mxu0 0.0
    %344 = vmatpush1.xpose.msra.mxu0 0.0
    %345 = vmatprep.subr.mxu0 0.0
    %346 = vmatpush1.xpose.msra.mxu0 0.0
    %347 = vmatprep.subr.mxu0 0.0
    %348 = vmatpush1.xpose.msra.mxu0 0.0
    %349 = vmatprep.subr.mxu0 0.0
    %350 = vmatpush1.xpose.msra.mxu0 0.0
    %351 = vmatprep.subr.mxu0 %v179
    %352 = vmatpush1.xpose.msra.mxu0 %v177
    %353 = vmatprep.subr.mxu0 0.0
    %354 = vmatpush2.xpose.msra.mxu0 0.0
    %355 = vmatprep.subr.mxu0 0.0
    %356 = vmatpush2.xpose.msra.mxu0 0.0
    %357 = vmatprep.subr.mxu0 0.0
    %358 = vmatpush2.xpose.msra.mxu0 0.0
    %359 = vmatprep.subr.mxu0 0.0
    %360 = vmatpush2.xpose.msra.mxu0 0.0
    %361 = vmatprep.subr.mxu0 0.0
    %362 = vmatpush2.xpose.msra.mxu0 0.0
    %363 = vmatprep.subr.mxu0 0.0
    %364 = vmatpush2.xpose.msra.mxu0 0.0
    %365 = vmatprep.subr.mxu0 0.0
    %366 = vmatpush2.xpose.msra.mxu0 0.0
    %367 = vmatprep.subr.mxu0 0.0
    %368 = vmatpush2.xpose.msra.mxu0 0.0
    %369 = vmatprep.subr.mxu0 0.0
    %370 = vmatpush2.xpose.msra.mxu0 0.0
    %371 = vmatprep.subr.mxu0 0.0
    %372 = vmatpush2.xpose.msra.mxu0 0.0
    %373 = vmatprep.subr.mxu0 0.0
    %374 = vmatpush2.xpose.msra.mxu0 0.0
    %375 = vmatprep.subr.mxu0 0.0
    %376 = vmatpush2.xpose.msra.mxu0 0.0
    %377 = vmatprep.subr.mxu0 0.0
    %378 = vmatpush2.xpose.msra.mxu0 0.0
    %379 = vmatprep.subr.mxu0 0.0
    %380 = vmatpush2.xpose.msra.mxu0 0.0
    %381 = vmatprep.subr.mxu0 0.0
    %382 = vmatpush2.xpose.msra.mxu0 0.0
    %383 = vmatprep.subr.mxu0 0.0
    %384 = vmatpush2.xpose.msra.mxu0 0.0
    %385 = vmatprep.mubr.f32.mxu0 %v319
    %386 = vmatmul.mubr.f32.gmra.mxu0 %v318
    %v387 = vpop.f32.mrf.mxu0
    %v388 = vadd.f32 0.0, %v387
    %v389 = vpop.f32.mrf.mxu0
    %390 = vdwg.mxu0
    %392 = vmatprep.subr.mxu0 0.0
    %393 = vmatpush1.xpose.msra.mxu0 0.0
    %394 = vmatprep.subr.mxu0 0.0
    %395 = vmatpush1.xpose.msra.mxu0 0.0
    %396 = vmatprep.subr.mxu0 0.0
    %397 = vmatpush1.xpose.msra.mxu0 0.0
    %398 = vmatprep.subr.mxu0 0.0
    %399 = vmatpush1.xpose.msra.mxu0 0.0
    %400 = vmatprep.subr.mxu0 0.0
    %401 = vmatpush1.xpose.msra.mxu0 0.0
    %402 = vmatprep.subr.mxu0 0.0
    %403 = vmatpush1.xpose.msra.mxu0 0.0
    %404 = vmatprep.subr.mxu0 0.0
    %405 = vmatpush1.xpose.msra.mxu0 0.0
    %406 = vmatprep.subr.mxu0 0.0
    %407 = vmatpush1.xpose.msra.mxu0 0.0
    %408 = vmatprep.subr.mxu0 0.0
    %409 = vmatpush1.xpose.msra.mxu0 0.0
    %410 = vmatprep.subr.mxu0 0.0
    %411 = vmatpush1.xpose.msra.mxu0 0.0
    %412 = vmatprep.subr.mxu0 0.0
    %413 = vmatpush1.xpose.msra.mxu0 0.0
    %414 = vmatprep.subr.mxu0 0.0
    %415 = vmatpush1.xpose.msra.mxu0 0.0
    %416 = vmatprep.subr.mxu0 0.0
    %417 = vmatpush1.xpose.msra.mxu0 0.0
    %418 = vmatprep.subr.mxu0 0.0
    %419 = vmatpush1.xpose.msra.mxu0 0.0
    %420 = vmatprep.subr.mxu0 0.0
    %421 = vmatpush1.xpose.msra.mxu0 0.0
    %422 = vmatprep.subr.mxu0 %v27
    %423 = vmatpush1.xpose.msra.mxu0 %v20
    %424 = vmatprep.subr.mxu0 0.0
    %425 = vmatpush2.xpose.msra.mxu0 0.0
    %426 = vmatprep.subr.mxu0 0.0
    %427 = vmatpush2.xpose.msra.mxu0 0.0
    %428 = vmatprep.subr.mxu0 0.0
    %429 = vmatpush2.xpose.msra.mxu0 0.0
    %430 = vmatprep.subr.mxu0 0.0
    %431 = vmatpush2.xpose.msra.mxu0 0.0
    %432 = vmatprep.subr.mxu0 0.0
    %433 = vmatpush2.xpose.msra.mxu0 0.0
    %434 = vmatprep.subr.mxu0 0.0
    %435 = vmatpush2.xpose.msra.mxu0 0.0
    %436 = vmatprep.subr.mxu0 0.0
    %437 = vmatpush2.xpose.msra.mxu0 0.0
    %438 = vmatprep.subr.mxu0 0.0
    %439 = vmatpush2.xpose.msra.mxu0 0.0
    %440 = vmatprep.subr.mxu0 0.0
    %441 = vmatpush2.xpose.msra.mxu0 0.0
    %442 = vmatprep.subr.mxu0 0.0
    %443 = vmatpush2.xpose.msra.mxu0 0.0
    %444 = vmatprep.subr.mxu0 0.0
    %445 = vmatpush2.xpose.msra.mxu0 0.0
    %446 = vmatprep.subr.mxu0 0.0
    %447 = vmatpush2.xpose.msra.mxu0 0.0
    %448 = vmatprep.subr.mxu0 0.0
    %449 = vmatpush2.xpose.msra.mxu0 0.0
    %450 = vmatprep.subr.mxu0 0.0
    %451 = vmatpush2.xpose.msra.mxu0 0.0
    %452 = vmatprep.subr.mxu0 0.0
    %453 = vmatpush2.xpose.msra.mxu0 0.0
    %454 = vmatprep.subr.mxu0 0.0
    %455 = vmatpush2.xpose.msra.mxu0 0.0
    %456 = vmatprep.mubr.f32.mxu0 %v171
    %457 = vmatmul.mubr.f32.gmra.mxu0 %v170
    %v458 = vpop.f32.mrf.mxu0
    %v459 = vadd.f32 %v388, %v458
    %v460 = vpop.f32.mrf.mxu0
    %461 = vdwg.mxu0
    %v462 = vadd.f32 %v318, %v319
    %463 = vadd.xlane.f32.xlu0 %v462
    %v464 = vpop.xlane.xlu0 %463
    %v465 = vadd.f32 %v175, %v464
    %466 = vst.msk [vmem:[%s4] sm:$0xff] %vm28, %v459
    %vm467 = vcmask 7168
    %468 = vst.msk [vmem:[%s5] sm:$0xff] %vm467, %v465
    // Predicated region
    $region14: #{tpu_custom_call.1} parent=1 // pred_check
      _
    $region15: #{tpu_custom_call.1} parent=1 // pred_check_branch
      %470 = sbr.rel (0) target = $region17
    $region16: #{tpu_custom_call.1} parent=1 // pred_region
      %s472 = ssub.s32 512, 512
      %473 = vsyncadd [#allocation3], %s472
      %s474 = sshll.u32 [#allocation2], 4
      %s475 = int_to_ptr.vmem [resolvable:$true] %s474
      %480 = dma.vmem_to_hbm [thread:$0]  %s475, 512, %s3, [#allocation3], 256, 256, 16
    $region17: #{tpu_custom_call.1} parent=1 // pred_fallthru
      _
    // Predicated region
    $region18: #{tpu_custom_call.1} parent=1 // pred_check
      _
    $region19: #{tpu_custom_call.1} parent=1 // pred_check_branch
      %482 = sbr.rel (0) target = $region21
    $region20: #{tpu_custom_call.1} parent=1 // pred_region
      _
    $region21: #{tpu_custom_call.1} parent=1 // pred_fallthru
      _
    // Predicated region
    $region22: #{tpu_custom_call.1} parent=1 // pred_check
      _
    $region23: #{tpu_custom_call.1} parent=1 // pred_check_branch
      %484 = sbr.rel (0) target = $region25
    $region24: #{tpu_custom_call.1} parent=1 // pred_region
      _
    $region25: #{tpu_custom_call.1} parent=1 // pred_fallthru
      _
    // Predicated region
    $region26: #{tpu_custom_call.1} parent=1 // pred_check
      _
    $region27: #{tpu_custom_call.1} parent=1 // pred_check_branch
      %486 = sbr.rel (0) target = $region29
    $region28: #{tpu_custom_call.1} parent=1 // pred_region
      %487 = dma.done [#allocation3], 512
    $region29: #{tpu_custom_call.1} parent=1 // pred_fallthru
      _
    // Predicated region
    $region30: #{tpu_custom_call.1} parent=1 // pred_check
      _
    $region31: #{tpu_custom_call.1} parent=1 // pred_check_branch
      %489 = sbr.rel (0) target = $region33
    $region32: #{tpu_custom_call.1} parent=1 // pred_region
      _
    $region33: #{tpu_custom_call.1} parent=1 // pred_fallthru
      _
    // Predicated region
    $region34: #{tpu_custom_call.1} parent=1 // pred_check
      _
    $region35: #{tpu_custom_call.1} parent=1 // pred_check_branch
      %491 = sbr.rel (0) target = $region37
    $region36: #{tpu_custom_call.1} parent=1 // pred_region
      _
    $region37: #{tpu_custom_call.1} parent=1 // pred_fallthru
      _
    %492 = vsyncpa [#allocation3], 1

</llo_original>
